<compile_context>
chip_gen: v5e
topology: v5e:2x2
jax: 0.10.0
libtpu: 0.0.40
codegen_flags: <defaults>
</compile_context>

<pallas_src>
import functools

import jax
import jax.numpy as jnp
from jax.experimental import pallas as pl
from jax.experimental.pallas import tpu as pltpu


_NEG_LARGE = float(jnp.finfo(jnp.float32).min)  # pad-bias: padded classes never win argmax

_TM_CAP = 512          # batch tile cap
_TN_SINGLE_CAP = 1024  # collapse the class axis when round_up(C,128) <= this
_TN_MULTI = 512        # class tile when the 3-D fallback path is used
_TK_CAP = 4096         # reduction tile cap


# ---------------------------------------------------------------------------
# helpers
# ---------------------------------------------------------------------------
def _round_up(v, m):
    return (v + m - 1) // m * m


def _cdiv(a, b):
    return (a + b - 1) // b


def _vmem_budget_bytes():
    """Per-kernel VMEM budget with headroom, scaled to the chip generation."""
    try:
        cap = pltpu.get_tpu_info().vmem_capacity_bytes
    except Exception:
        cap = 64 * 1024 * 1024  # conservative (v7x-sized) fallback
    # ~3/4 of physical, capped at 96 MiB: 96 MiB on v5e/v6e (128 MiB), 48 MiB on v7x (64 MiB).
    return min(cap * 3 // 4, 96 * 1024 * 1024)


def _tile_sizes(B, F, C, in_itemsize, budget):
    """Pick (tm, tn, tk, single_class_tile) to fill the VMEM budget with headroom."""
    Cp128 = _round_up(C, 128)
    single_n = Cp128 <= _TN_SINGLE_CAP
    tn = Cp128 if single_n else _TN_MULTI

    B8 = _round_up(B, 8)
    nb = _cdiv(B8, _TM_CAP)
    tm = _round_up(_cdiv(B8, nb), 8)

    # VMEM working set: double-buffered x/w/bias inputs, double-buffered output
    # tile, f32 accumulator, plus ~4 MiB of headroom for compiler scratch.
    fixed = 2 * tm * tn * 4 + tm * tn * 4 + 2 * tn * 4 + 4 * 1024 * 1024
    avail = max(budget - fixed, 2 * 128 * (tm + tn) * in_itemsize)
    tk_max = max(128, min(_TK_CAP, (avail // (2 * (tm + tn) * in_itemsize)) // 128 * 128))

    # Balance the k tiles to minimize feature padding.
    F128 = _round_up(F, 128)
    nk = _cdiv(F128, tk_max)
    tk = _round_up(_cdiv(F128, nk), 128)
    return tm, tn, tk, single_n


def _pad_2d(a, rows, cols):
    r, c = a.shape
    if (r, c) == (rows, cols):
        return a  # already tile-aligned: no wrapper-side copy
    return jnp.pad(a, ((0, rows - r), (0, cols - c)))


def _prepare(x, w, b):
    B, F = x.shape
    F2, C = w.shape
    assert F == F2 and b.shape == (C,), "shape mismatch"

    budget = _vmem_budget_bytes()
    in_itemsize = max(x.dtype.itemsize, w.dtype.itemsize)
    tm, tn, tk, single_n = _tile_sizes(B, F, C, in_itemsize, budget)

    Bp = _round_up(B, tm)
    Fp = _round_up(F, tk)
    Cp = _round_up(C, tn)

    x_p = _pad_2d(x, Bp, Fp)                      # zero rows/cols: no-op in dot
    w_p = _pad_2d(w, Fp, Cp)
    b_row = b.reshape(1, C).astype(jnp.float32)
    b_p = b_row if Cp == C else jnp.pad(
        b_row, ((0, 0), (0, Cp - C)), constant_values=_NEG_LARGE)

    meta = dict(B=B, F=F, C=C, Bp=Bp, Fp=Fp, Cp=Cp,
                tm=tm, tn=tn, tk=tk, single_n=single_n, budget=budget)
    return x_p, w_p, b_p, meta


def _cast_operands(x_tile, w_tile, mxu_dtype):
    if mxu_dtype is not None:
        return x_tile.astype(mxu_dtype), w_tile.astype(mxu_dtype)
    return x_tile, w_tile


def _tile_argmax(logits, col_offset):
    """(tm, tn) logits -> (tm,1) max and (tm,1) int32 first-occurrence argmax."""
    tile_max = jnp.max(logits, axis=1, keepdims=True)
    # f32 index encoding is exact for class indices < 2**24 (~16.7M classes).
    col = (jax.lax.broadcasted_iota(jnp.int32, logits.shape, 1) + col_offset
           ).astype(jnp.float32)
    tile_arg = jnp.min(jnp.where(logits == tile_max, col, jnp.inf),
                       axis=1, keepdims=True).astype(jnp.int32)
    return tile_max, tile_arg


# ---------------------------------------------------------------------------
# kernels — single class tile (2-D grid: batch tiles x k tiles)
# ---------------------------------------------------------------------------
def _linear_kernel_nj1(x_ref, w_ref, b_ref, o_ref, acc_ref, *, mxu_dtype):
    k = pl.program_id(1)

    @pl.when(k == 0)
    def _():
        acc_ref[...] = jnp.zeros_like(acc_ref)

    a, wt = _cast_operands(x_ref[...], w_ref[...], mxu_dtype)
    acc_ref[...] += jnp.dot(a, wt, preferred_element_type=jnp.float32)

    @pl.when(k == pl.num_programs(1) - 1)
    def _():
        o_ref[...] = (acc_ref[...] + b_ref[...]).astype(o_ref.dtype)


def _argmax_kernel_nj1(x_ref, w_ref, b_ref, pred_ref, acc_ref, *, mxu_dtype):
    k = pl.program_id(1)

    @pl.when(k == 0)
    def _():
        acc_ref[...] = jnp.zeros_like(acc_ref)

    a, wt = _cast_operands(x_ref[...], w_ref[...], mxu_dtype)
    acc_ref[...] += jnp.dot(a, wt, preferred_element_type=jnp.float32)

    @pl.when(k == pl.num_programs(1) - 1)
    def _():
        logits = acc_ref[...] + b_ref[...]   # padded classes carry -FLT_MAX bias
        _, arg = _tile_argmax(logits, 0)
        pred_ref[...] = arg


# ---------------------------------------------------------------------------
# kernels — multi class tile fallback (3-D grid: batch x class x k)
# ---------------------------------------------------------------------------
def _linear_kernel_3d(x_ref, w_ref, b_ref, o_ref, acc_ref, *, mxu_dtype):
    k = pl.program_id(2)

    @pl.when(k == 0)
    def _():
        acc_ref[...] = jnp.zeros_like(acc_ref)

    a, wt = _cast_operands(x_ref[...], w_ref[...], mxu_dtype)
    acc_ref[...] += jnp.dot(a, wt, preferred_element_type=jnp.float32)

    @pl.when(k == pl.num_programs(2) - 1)
    def _():
        o_ref[...] = (acc_ref[...] + b_ref[...]).astype(o_ref.dtype)


def _argmax_kernel_3d(x_ref, w_ref, b_ref, pred_ref,
                      acc_ref, max_ref, idx_ref, *, mxu_dtype):
    j = pl.program_id(1)
    k = pl.program_id(2)
    nj = pl.num_programs(1)
    nk = pl.num_programs(2)

    @pl.when((j == 0) & (k == 0))
    def _():
        max_ref[...] = jnp.full_like(max_ref, _NEG_LARGE)
        idx_ref[...] = jnp.zeros_like(idx_ref)

    @pl.when(k == 0)
    def _():
        acc_ref[...] = jnp.zeros_like(acc_ref)

    a, wt = _cast_operands(x_ref[...], w_ref[...], mxu_dtype)
    acc_ref[...] += jnp.dot(a, wt, preferred_element_type=jnp.float32)

    @pl.when(k == nk - 1)
    def _():
        logits = acc_ref[...] + b_ref[...]
        tile_max, tile_arg = _tile_argmax(logits, j * logits.shape[1])
        better = tile_max > max_ref[...]      # strict '>' keeps earliest index on ties
        idx_ref[...] = jnp.where(better, tile_arg, idx_ref[...])
        max_ref[...] = jnp.where(better, tile_max, max_ref[...])

        @pl.when(j == nj - 1)
        def _():
            pred_ref[...] = idx_ref[...]


# ---------------------------------------------------------------------------
# wrappers
# ---------------------------------------------------------------------------
def classifier_forward(x, w, b, *, mxu_dtype=None):
    """logits = x @ w + b  (tiled Pallas TPU kernel).

    x: (B, F), w: (F, C), b: (C,) -> (B, C) f32 logits.
    mxu_dtype=jnp.bfloat16 casts dot operands in-kernel (f32 accumulation).
    """
    x_p, w_p, b_p, m = _prepare(x, w, b)
    B, C = m["B"], m["C"]
    Bp, Fp, Cp = m["Bp"], m["Fp"], m["Cp"]
    tm, tn, tk = m["tm"], m["tn"], m["tk"]
    nb, nj, nk = Bp // tm, Cp // tn, Fp // tk

    cost = pl.CostEstimate(
        flops=2 * Bp * Fp * Cp,
        transcendentals=0,
        bytes_accessed=(x_p.dtype.itemsize * Bp * Fp * nj       # X re-read per class tile
                        + w_p.dtype.itemsize * Fp * Cp * nb     # W re-read per batch tile
                        + 4 * Cp + 4 * Bp * Cp),
    )

    if m["single_n"]:
        grid = (nb, nk)
        in_specs = [
            pl.BlockSpec((tm, tk), lambda i, k: (i, k)),
            pl.BlockSpec((tk, tn), lambda i, k: (k, 0)),
            pl.BlockSpec((1, tn), lambda i, k: (0, 0)),
        ]
        out_specs = pl.BlockSpec((tm, tn), lambda i, k: (i, 0))
        kernel = functools.partial(_linear_kernel_nj1, mxu_dtype=mxu_dtype)
        dim_sem = ("parallel", "arbitrary")
    else:
        grid = (nb, nj, nk)
        in_specs = [
            pl.BlockSpec((tm, tk), lambda i, j, k: (i, k)),
            pl.BlockSpec((tk, tn), lambda i, j, k: (k, j)),
            pl.BlockSpec((1, tn), lambda i, j, k: (0, j)),
        ]
        out_specs = pl.BlockSpec((tm, tn), lambda i, j, k: (i, j))
        kernel = functools.partial(_linear_kernel_3d, mxu_dtype=mxu_dtype)
        dim_sem = ("parallel", "parallel", "arbitrary")

    out = pl.pallas_call(
        kernel,
        out_shape=jax.ShapeDtypeStruct((Bp, Cp), jnp.float32),
        grid_spec=pltpu.PrefetchScalarGridSpec(
            num_scalar_prefetch=0,
            grid=grid,
            in_specs=in_specs,
            out_specs=out_specs,
            scratch_shapes=[pltpu.VMEM((tm, tn), jnp.float32)],
        ),
        compiler_params=pltpu.CompilerParams(
            dimension_semantics=dim_sem,
            vmem_limit_bytes=m["budget"],
        ),
        cost_estimate=cost,
    )(x_p, w_p, b_p)

    if Bp == B and Cp == C:
        return out
    return out[:B, :C]


def classifier_predict(x, w, b, *, mxu_dtype=None):
    """predict(X) = argmax(X @ W + b, axis=1), fused (no (B,C) logits round-trip)."""
    x_p, w_p, b_p, m = _prepare(x, w, b)
    B, C = m["B"], m["C"]
    Bp, Fp, Cp = m["Bp"], m["Fp"], m["Cp"]
    tm, tn, tk = m["tm"], m["tn"], m["tk"]
    nb, nj, nk = Bp // tm, Cp // tn, Fp // tk

    cost = pl.CostEstimate(
        flops=2 * Bp * Fp * Cp,
        transcendentals=0,
        bytes_accessed=(x_p.dtype.itemsize * Bp * Fp * nj
                        + w_p.dtype.itemsize * Fp * Cp * nb
                        + 4 * Cp + 4 * Bp),
    )

    if m["single_n"]:
        grid = (nb, nk)
        in_specs = [
            pl.BlockSpec((tm, tk), lambda i, k: (i, k)),
            pl.BlockSpec((tk, tn), lambda i, k: (k, 0)),
            pl.BlockSpec((1, tn), lambda i, k: (0, 0)),
        ]
        out_specs = pl.BlockSpec((tm, 1), lambda i, k: (i, 0))
        scratch = [pltpu.VMEM((tm, tn), jnp.float32)]            # logits accumulator
        kernel = functools.partial(_argmax_kernel_nj1, mxu_dtype=mxu_dtype)
        dim_sem = ("parallel", "arbitrary")
    else:
        grid = (nb, nj, nk)
        in_specs = [
            pl.BlockSpec((tm, tk), lambda i, j, k: (i, k)),
            pl.BlockSpec((tk, tn), lambda i, j, k: (k, j)),
            pl.BlockSpec((1, tn), lambda i, j, k: (0, j)),
        ]
        out_specs = pl.BlockSpec((tm, 1), lambda i, j, k: (i, 0))
        scratch = [pltpu.VMEM((tm, tn), jnp.float32),            # logits accumulator
                   pltpu.VMEM((tm, 1), jnp.float32),             # running max
                   pltpu.VMEM((tm, 1), jnp.int32)]               # running argmax
        kernel = functools.partial(_argmax_kernel_3d, mxu_dtype=mxu_dtype)
        dim_sem = ("parallel", "arbitrary", "arbitrary")

    preds = pl.pallas_call(
        kernel,
        out_shape=jax.ShapeDtypeStruct((Bp, 1), jnp.int32),
        grid_spec=pltpu.PrefetchScalarGridSpec(
            num_scalar_prefetch=0,
            grid=grid,
            in_specs=in_specs,
            out_specs=out_specs,
            scratch_shapes=scratch,
        ),
        compiler_params=pltpu.CompilerParams(
            dimension_semantics=dim_sem,
            vmem_limit_bytes=m["budget"],
        ),
        cost_estimate=cost,
    )(x_p, w_p, b_p)

    preds = preds.reshape(Bp)
    return preds if Bp == B else preds[:B]


# ---------------------------------------------------------------------------
# self-test
# ---------------------------------------------------------------------------
if __name__ == "__main__":
    def _reference(x, w, b):
        return jnp.dot(x, w, precision=jax.lax.Precision.HIGHEST) + b[None, :]

    # 1) Small shapes consistent with Classifier(name, num_classes, bias=True).
    B, F, C = 8, 32, 10
    kx, kw, kb = jax.random.split(jax.random.PRNGKey(0), 3)
    x = jax.random.normal(kx, (B, F), dtype=jnp.float32)
    w = jax.random.normal(kw, (F, C), dtype=jnp.float32) * 0.1
    b = jax.random.normal(kb, (C,), dtype=jnp.float32) * 0.1

    logits = jax.block_until_ready(classifier_forward(x, w, b))
    assert logits.shape == (B, C)
    assert jnp.allclose(logits, _reference(x, w, b), atol=5e-4, rtol=5e-4)

    preds = jax.block_until_ready(classifier_predict(x, w, b))
    assert preds.shape == (B,)
    assert jnp.array_equal(preds, jnp.argmax(logits, axis=1).astype(jnp.int32))

    # 2) Tile-aligned shapes: exercises the no-pad / no-slice fast path.
    B2, F2, C2 = 256, 512, 128
    kx2, kw2, kb2 = jax.random.split(jax.random.PRNGKey(1), 3)
    x2 = jax.random.normal(kx2, (B2, F2), dtype=jnp.float32)
    w2 = jax.random.normal(kw2, (F2, C2), dtype=jnp.float32) * 0.05
    b2 = jax.random.normal(kb2, (C2,), dtype=jnp.float32) * 0.05
    logits2 = jax.block_until_ready(classifier_forward(x2, w2, b2))
    assert logits2.shape == (B2, C2)
    assert jnp.allclose(logits2, _reference(x2, w2, b2), atol=2e-3, rtol=2e-3)
    preds2 = jax.block_until_ready(classifier_predict(x2, w2, b2))
    assert jnp.array_equal(preds2, jnp.argmax(logits2, axis=1).astype(jnp.int32))

    # 3) Ragged shapes: exercises padding + single-class-tile (2-D grid) path.
    B3, F3, C3 = 300, 600, 260
    kx3, kw3, kb3 = jax.random.split(jax.random.PRNGKey(2), 3)
    x3 = jax.random.normal(kx3, (B3, F3), dtype=jnp.float32)
    w3 = jax.random.normal(kw3, (F3, C3), dtype=jnp.float32) * 0.05
    b3 = jax.random.normal(kb3, (C3,), dtype=jnp.float32) * 0.05
    logits3 = jax.block_until_ready(classifier_forward(x3, w3, b3))
    assert logits3.shape == (B3, C3)
    assert jnp.allclose(logits3, _reference(x3, w3, b3), atol=2e-3, rtol=2e-3)
    preds3 = jax.block_until_ready(classifier_predict(x3, w3, b3))
    assert preds3.shape == (B3,)
    assert jnp.array_equal(preds3, jnp.argmax(logits3, axis=1).astype(jnp.int32))

    # 4) Large num_classes: exercises the 3-D fallback grid + running argmax merge.
    B4, F4, C4 = 128, 384, 1300
    kx4, kw4, kb4 = jax.random.split(jax.random.PRNGKey(3), 3)
    x4 = jax.random.normal(kx4, (B4, F4), dtype=jnp.float32)
    w4 = jax.random.normal(kw4, (F4, C4), dtype=jnp.float32) * 0.05
    b4 = jax.random.normal(kb4, (C4,), dtype=jnp.float32) * 0.05
    logits4 = jax.block_until_ready(classifier_forward(x4, w4, b4))
    assert logits4.shape == (B4, C4)
    assert jnp.allclose(logits4, _reference(x4, w4, b4), atol=2e-3, rtol=2e-3)
    preds4 = jax.block_until_ready(classifier_predict(x4, w4, b4))
    assert jnp.array_equal(preds4, jnp.argmax(logits4, axis=1).astype(jnp.int32))

    # 5) Optional bf16 MXU-operand path (f32 accumulation), looser tolerance.
    logits_bf = jax.block_until_ready(
        classifier_forward(x3, w3, b3, mxu_dtype=jnp.bfloat16))
    assert jnp.allclose(logits_bf, _reference(x3, w3, b3), atol=5e-2, rtol=5e-2)
    preds_bf = jax.block_until_ready(
        classifier_predict(x3, w3, b3, mxu_dtype=jnp.bfloat16))
    assert jnp.array_equal(preds_bf, jnp.argmax(logits_bf, axis=1).astype(jnp.int32))

    print("KERNEL_OK")
</pallas_src>

<mosaic_0001>
module attributes {stable_mosaic.version = 11 : i64} {
  func.func @_linear_kernel_nj1(%arg0: i32, %arg1: i32, %arg2: memref<8x128xf32, #tpu.memory_space<vmem>>, %arg3: memref<128x128xf32, #tpu.memory_space<vmem>>, %arg4: memref<1x128xf32, #tpu.memory_space<vmem>>, %arg5: memref<8x128xf32, #tpu.memory_space<vmem>>, %arg6: memref<8x128xf32, #tpu.memory_space<vmem>>) attributes {dimension_semantics = [#tpu.dimension_semantics<parallel>, #tpu.dimension_semantics<arbitrary>], iteration_bounds = array<i64: 1, 1>, scalar_prefetch = 0 : i64, scratch_operands = 1 : i64, tpu.core_type = #tpu.core_type<tc>, window_params = [{transform_indices = @transform_0, window_bounds = array<i64: 8, 128>}, {transform_indices = @transform_1, window_bounds = array<i64: 128, 128>}, {pipeline_mode = #tpu.pipeline_mode<synchronous>, transform_indices = @transform_2, window_bounds = array<i64: 1, 128>}, {transform_indices = @transform_3, window_bounds = array<i64: 8, 128>}]} {
    %c0_i32 = arith.constant 0 : i32
    %0 = arith.cmpi eq, %arg1, %c0_i32 : i32
    %1 = arith.extui %0 : i1 to i32
    %c0_i32_0 = arith.constant 0 : i32
    %2 = arith.cmpi ne, %1, %c0_i32_0 : i32
    scf.if %2 {
      %cst_10 = arith.constant 0.000000e+00 : f32
      %12 = vector.broadcast %cst_10 : f32 to vector<8x128xf32>
      %c0_11 = arith.constant 0 : index
      %c0_12 = arith.constant 0 : index
      %13 = vector.load %arg6[%c0_11, %c0_12] : memref<8x128xf32, #tpu.memory_space<vmem>>, vector<8x128xf32>
      tpu.vector_store %arg6[%c0_11, %c0_12], %12 {strides = array<i32>} : memref<8x128xf32, #tpu.memory_space<vmem>>, vector<8x128xf32>,
    } else {
    }
    %c0 = arith.constant 0 : index
    %c0_1 = arith.constant 0 : index
    %3 = vector.load %arg2[%c0, %c0_1] : memref<8x128xf32, #tpu.memory_space<vmem>>, vector<8x128xf32>
    %c0_2 = arith.constant 0 : index
    %c0_3 = arith.constant 0 : index
    %4 = vector.load %arg3[%c0_2, %c0_3] : memref<128x128xf32, #tpu.memory_space<vmem>>, vector<128x128xf32>
    %c0_4 = arith.constant 0 : index
    %c0_5 = arith.constant 0 : index
    %5 = vector.load %arg6[%c0_4, %c0_5] : memref<8x128xf32, #tpu.memory_space<vmem>>, vector<8x128xf32>
    %cst = arith.constant dense<0.000000e+00> : vector<8x128xf32>
    %6 = tpu.matmul %3, %4, %cst {dimension_numbers = #tpu.dot_dimension_numbers<[1], [0], [0], [1], [0, 0, 1, 1], [], []>} : vector<8x128xf32>, vector<128x128xf32>, vector<8x128xf32> -> vector<8x128xf32>
    %7 = arith.addf %5, %6 : vector<8x128xf32>
    %c0_6 = arith.constant 0 : index
    %c0_7 = arith.constant 0 : index
    %8 = vector.load %arg6[%c0_6, %c0_7] : memref<8x128xf32, #tpu.memory_space<vmem>>, vector<8x128xf32>
    tpu.vector_store %arg6[%c0_6, %c0_7], %7 {strides = array<i32>} : memref<8x128xf32, #tpu.memory_space<vmem>>, vector<8x128xf32>,
    %c0_i32_8 = arith.constant 0 : i32
    %9 = arith.cmpi eq, %arg1, %c0_i32_8 : i32
    %10 = arith.extui %9 : i1 to i32
    %c0_i32_9 = arith.constant 0 : i32
    %11 = arith.cmpi ne, %10, %c0_i32_9 : i32
    scf.if %11 {
      %c0_10 = arith.constant 0 : index
      %c0_11 = arith.constant 0 : index
      %12 = vector.load %arg6[%c0_10, %c0_11] : memref<8x128xf32, #tpu.memory_space<vmem>>, vector<8x128xf32>
      %c0_12 = arith.constant 0 : index
      %c0_13 = arith.constant 0 : index
      %13 = vector.load %arg4[%c0_12, %c0_13] : memref<1x128xf32, #tpu.memory_space<vmem>>, vector<1x128xf32>
      %14 = vector.broadcast %13 : vector<1x128xf32> to vector<8x128xf32>
      %15 = arith.addf %12, %14 : vector<8x128xf32>
      %c0_14 = arith.constant 0 : index
      %c0_15 = arith.constant 0 : index
      %16 = vector.load %arg5[%c0_14, %c0_15] : memref<8x128xf32, #tpu.memory_space<vmem>>, vector<8x128xf32>
      tpu.vector_store %arg5[%c0_14, %c0_15], %15 {strides = array<i32>} : memref<8x128xf32, #tpu.memory_space<vmem>>, vector<8x128xf32>,
    } else {
    }
    return
  }
  func.func @transform_0(%arg0: i32, %arg1: i32) -> (i32, i32) {
    %c0_i32 = arith.constant 0 : i32
    return %arg0, %arg1 : i32, i32
  }
  func.func @transform_1(%arg0: i32, %arg1: i32) -> (i32, i32) {
    %c0_i32 = arith.constant 0 : i32
    %c0_i32_0 = arith.constant 0 : i32
    return %arg1, %c0_i32 : i32, i32
  }
  func.func @transform_2(%arg0: i32, %arg1: i32) -> (i32, i32) {
    %c0_i32 = arith.constant 0 : i32
    %c0_i32_0 = arith.constant 0 : i32
    %c0_i32_1 = arith.constant 0 : i32
    return %c0_i32, %c0_i32_0 : i32, i32
  }
  func.func @transform_3(%arg0: i32, %arg1: i32) -> (i32, i32) {
    %c0_i32 = arith.constant 0 : i32
    %c0_i32_0 = arith.constant 0 : i32
    return %arg0, %c0_i32 : i32, i32
  }
}

</mosaic_0001>

<llo_original>
// kernel: tpu_custom_call.1
$region0: #{tpu_custom_call.1}
  #allocation0 [shape = 'u32[]', space=smem, size = 0x4, offset = 0x4, fixed_abs, tag = 'smem constant byte address 0x4 - core index']
  #allocation1 [shape = 'u32[72,128]{1,0:T(1,128)}', space=vmem, size = 0x9000, scoped, tag = 'internal scratch']
  #allocation2 [shape = 'f32[8,128]{1,0:T(8,128)}', space=vmem, size = 0x1000, scoped, tag = 'scratch operand']
  %s0 = inlined_call_operand.hbm [shape: f32[8,128], index: 0, kind: input, shape index: {}]
  %s1 = inlined_call_operand.hbm [shape: f32[128,128], index: 1, kind: input, shape index: {}]
  %s2 = inlined_call_operand.vmem [shape: f32[1,128], index: 2, kind: input, shape index: {}]
  %s3 = inlined_call_operand.hbm [shape: f32[8,128], index: 3, kind: output, shape index: {}]
  %s4 = sld [smem:[#allocation0]]
  $region38: #{tpu_custom_call.1} parent=0
    _
  %s6 = ssub.s32 1, %s4
  %s7 = scalar_select 0, %s6, %s4
  $region1: #{tpu_custom_call.1} parent=0
    #allocation3 [shape = 'u8[4096]{0}', space=vmem, size = 0x1000, scoped, tag = 'input window, operand 0, single buffered']
    #allocation4 [shape = 's32[1]{0}', space=sflag, size = 0x4, scoped, tag = 'scoped memory for tpu_custom_call.1']
    #allocation5 [shape = 's32[1]{0}', space=sflag, size = 0x4, scoped, tag = 'scoped memory for tpu_custom_call.1']
    #allocation6 [shape = 'u8[65536]{0}', space=vmem, size = 0x10000, scoped, tag = 'input window, operand 1, single buffered']
    #allocation7 [shape = 's32[1]{0}', space=sflag, size = 0x4, scoped, tag = 'scoped memory for tpu_custom_call.1']
    #allocation8 [shape = 'u8[4096]{0}', space=vmem, size = 0x1000, scoped, tag = 'output window, operand 0, single buffered']
    %8 = vsyncpa [#allocation4], 0
    %9 = vsyncpa [#allocation7], 0
    %10 = vsyncpa [#allocation5], 0
    // Predicated region
    $region2: #{tpu_custom_call.1} parent=1 // pred_check
      _
    $region3: #{tpu_custom_call.1} parent=1 // pred_check_branch
      %12 = sbr.rel (0) target = $region5
    $region4: #{tpu_custom_call.1} parent=1 // pred_region
      %14 = vsyncadd [#allocation4], 0
      %s16 = sshll.u32 %s0, 4
      %s17 = int_to_ptr.hbm [resolvable:$true] %s16
      %s18 = sshll.u32 [#allocation3], 4
      %s19 = int_to_ptr.vmem [resolvable:$true] %s18
      %21 = dma.hbm_to_vmem [thread:$0]  %s17, 128, %s19, [#allocation4]
    $region5: #{tpu_custom_call.1} parent=1 // pred_fallthru
      _
    // Predicated region
    $region6: #{tpu_custom_call.1} parent=1 // pred_check
      _
    $region7: #{tpu_custom_call.1} parent=1 // pred_check_branch
      %23 = sbr.rel (0) target = $region9
    $region8: #{tpu_custom_call.1} parent=1 // pred_region
      %25 = vsyncadd [#allocation7], 0
      %s26 = sshll.u32 %s1, 4
      %s27 = int_to_ptr.hbm [resolvable:$true] %s26
      %s28 = sshll.u32 [#allocation6], 4
      %s29 = int_to_ptr.vmem [resolvable:$true] %s28
      %34 = dma.hbm_to_vmem [thread:$0]  %s27, 2048, %s29, [#allocation7], 128, 128, 8
    $region9: #{tpu_custom_call.1} parent=1 // pred_fallthru
      _
    // Predicated region
    $region10: #{tpu_custom_call.1} parent=1 // pred_check
      _
    $region11: #{tpu_custom_call.1} parent=1 // pred_check_branch
      %36 = sbr.rel (0) target = $region13
    $region12: #{tpu_custom_call.1} parent=1 // pred_region
      _
    $region13: #{tpu_custom_call.1} parent=1 // pred_fallthru
      _
    // Predicated region
    $region14: #{tpu_custom_call.1} parent=1 // pred_check
      _
    $region15: #{tpu_custom_call.1} parent=1 // pred_check_branch
      %38 = sbr.rel (0) target = $region17
    $region16: #{tpu_custom_call.1} parent=1 // pred_region
      %40 = dma.done [#allocation4], 128
    $region17: #{tpu_custom_call.1} parent=1 // pred_fallthru
      _
    // Predicated region
    $region18: #{tpu_custom_call.1} parent=1 // pred_check
      _
    $region19: #{tpu_custom_call.1} parent=1 // pred_check_branch
      %42 = sbr.rel (0) target = $region21
    $region20: #{tpu_custom_call.1} parent=1 // pred_region
      %44 = dma.done [#allocation7], 2048
    $region21: #{tpu_custom_call.1} parent=1 // pred_fallthru
      _
    %p45 = scmp.eq.s32.totalorder 0, 0
    // Predicated region
    $region22: #{tpu_custom_call.1} parent=1 // pred_check
      %p46 = pneg %p45
    $region23: #{tpu_custom_call.1} parent=1 // pred_check_branch
      %48 = sbr.rel (%p46) target = $region25
    $region24: #{tpu_custom_call.1} parent=1 // pred_region
      %49 = vst [vmem:[#allocation2] sm:$0xff] 0.0
    $region25: #{tpu_custom_call.1} parent=1 // pred_fallthru
      _
    %v50 = vld [vmem:[#allocation3] sm:$0xff]
    %v51 = vld [vmem:[#allocation6] sm:$0xff]
    %v52 = vld [vmem:[#allocation6 + $0x8] sm:$0xff]
    %v53 = vld [vmem:[#allocation6 + $0x10] sm:$0xff]
    %v54 = vld [vmem:[#allocation6 + $0x18] sm:$0xff]
    %v55 = vld [vmem:[#allocation6 + $0x20] sm:$0xff]
    %v56 = vld [vmem:[#allocation6 + $0x28] sm:$0xff]
    %v57 = vld [vmem:[#allocation6 + $0x30] sm:$0xff]
    %v58 = vld [vmem:[#allocation6 + $0x38] sm:$0xff]
    %v59 = vld [vmem:[#allocation6 + $0x40] sm:$0xff]
    %v60 = vld [vmem:[#allocation6 + $0x48] sm:$0xff]
    %v61 = vld [vmem:[#allocation6 + $0x50] sm:$0xff]
    %v62 = vld [vmem:[#allocation6 + $0x58] sm:$0xff]
    %v63 = vld [vmem:[#allocation6 + $0x60] sm:$0xff]
    %v64 = vld [vmem:[#allocation6 + $0x68] sm:$0xff]
    %v65 = vld [vmem:[#allocation6 + $0x70] sm:$0xff]
    %v66 = vld [vmem:[#allocation6 + $0x78] sm:$0xff]
    %v67 = vld [vmem:[#allocation2] sm:$0xff]
    %68 = vmatpush.msra.mxu0 %v66
    %69 = vmatpush.msra.mxu0 %v65
    %70 = vmatpush.msra.mxu0 %v64
    %71 = vmatpush.msra.mxu0 %v63
    %72 = vmatpush.msra.mxu0 %v62
    %73 = vmatpush.msra.mxu0 %v61
    %74 = vmatpush.msra.mxu0 %v60
    %75 = vmatpush.msra.mxu0 %v59
    %76 = vmatpush.msra.mxu0 %v58
    %77 = vmatpush.msra.mxu0 %v57
    %78 = vmatpush.msra.mxu0 %v56
    %79 = vmatpush.msra.mxu0 %v55
    %80 = vmatpush.msra.mxu0 %v54
    %81 = vmatpush.msra.mxu0 %v53
    %82 = vmatpush.msra.mxu0 %v52
    %83 = vmatpush.msra.mxu0 %v51
    %84 = vmatmul.f32.gmra.mxu0 %v50
    %v85 = vpop.f32.mrf.mxu0
    %v86 = vadd.f32 0.0, %v85
    %87 = vdwg.mxu0
    %v88 = vadd.f32 %v67, %v86
    %89 = vst [vmem:[#allocation2] sm:$0xff] %v88
    // Predicated region
    $region26: #{tpu_custom_call.1} parent=1 // pred_check
      %p90 = pneg %p45
    $region27: #{tpu_custom_call.1} parent=1 // pred_check_branch
      %92 = sbr.rel (%p90) target = $region29
    $region28: #{tpu_custom_call.1} parent=1 // pred_region
      %v93 = vld [vmem:[#allocation2] sm:$0xff]
      %v94 = vld [vmem:[%s2] sm:$0x1]
      %v96 = vperm.slane %v94, 0
      %v98 = vadd.f32 %v93, %v96
      %99 = vst [vmem:[#allocation8] sm:$0xff] %v98
    $region29: #{tpu_custom_call.1} parent=1 // pred_fallthru
      _
    // Predicated region
    $region30: #{tpu_custom_call.1} parent=1 // pred_check
      _
    $region31: #{tpu_custom_call.1} parent=1 // pred_check_branch
      %101 = sbr.rel (0) target = $region33
    $region32: #{tpu_custom_call.1} parent=1 // pred_region
      %103 = vsyncadd [#allocation5], 0
      %s105 = sshll.u32 [#allocation8], 4
      %s106 = int_to_ptr.vmem [resolvable:$true] %s105
      %s107 = sshll.u32 %s3, 4
      %s108 = int_to_ptr.hbm [resolvable:$true] %s107
      %110 = dma.vmem_to_hbm [thread:$0]  %s106, 128, %s108, [#allocation5]
    $region33: #{tpu_custom_call.1} parent=1 // pred_fallthru
      _
    // Predicated region
    $region34: #{tpu_custom_call.1} parent=1 // pred_check
      _
    $region35: #{tpu_custom_call.1} parent=1 // pred_check_branch
      %112 = sbr.rel (0) target = $region37
    $region36: #{tpu_custom_call.1} parent=1 // pred_region
      %114 = dma.done [#allocation5], 128
    $region37: #{tpu_custom_call.1} parent=1 // pred_fallthru
      _
    %115 = vsyncpa [#allocation4], 1
    %116 = vsyncpa [#allocation7], 1
    %117 = vsyncpa [#allocation5], 1

</llo_original>
